<compile_context>
chip_gen: v7x
topology: tpu7x:2x2x1
jax: 0.10.0
libtpu: 0.0.40
codegen_flags: <defaults>
</compile_context>

<pallas_src>
import jax
import jax.numpy as jnp
from jax.experimental import pallas as pl
from jax.experimental.pallas import tpu as pltpu


def qnet_kernel(x_ref, w1_ref, b1_ref, w2_ref, b2_ref, out_ref):
    # x_ref : (S, TB)   batch on lanes
    # w1_ref: (H, S)    nn.Linear fc1.weight layout (out, in)
    # b1_ref: (H, 1)
    # w2_ref: (A, H)    nn.Linear fc2.weight layout (out, in)
    # b2_ref: (A, 1)
    # out   : (A, TB)
    x = x_ref[...]
    w1 = w1_ref[...]
    b1 = b1_ref[...]
    w2 = w2_ref[...]
    b2 = b2_ref[...]

    s_dim = x.shape[0]
    h_dim = w1.shape[0]

    # fc1 as K=state_dim broadcast-multiply-adds on the VPU (skip the MXU).
    h = w1[:, 0:1] * x[0:1, :]
    for k in range(1, s_dim):
        h = h + w1[:, k : k + 1] * x[k : k + 1, :]
    h = jnp.maximum(h + b1, 0.0)  # ReLU, bias broadcast along lanes

    # fc2 as K=hidden broadcast-multiply-adds on the VPU.
    out = w2[:, 0:1] * h[0:1, :]
    for k in range(1, h_dim):
        out = out + w2[:, k : k + 1] * h[k : k + 1, :]
    out = out + b2

    out_ref[...] = out.astype(out_ref.dtype)


def _round_up(n, m):
    return ((n + m - 1) // m) * m


def qnet_forward(x, w1, b1, w2, b2, *, batch_tile=512):
    """QNet forward.

    x : (B, state_dim)
    w1: (hidden, state_dim)   -- fc1.weight, PyTorch (out, in) layout
    b1: (hidden,)             -- fc1.bias
    w2: (action_dim, hidden)  -- fc2.weight
    b2: (action_dim,)         -- fc2.bias
    returns (B, action_dim)
    """
    B, S = x.shape
    H = w1.shape[0]
    A = w2.shape[0]

    # Lane tile for the batch axis: multiple of 128, capped at batch_tile.
    tb = min(_round_up(batch_tile, 128), _round_up(B, 128))
    b_pad = _round_up(B, tb)

    # Batch on lanes: pad + transpose in the wrapper (layout plumbing only).
    x_t = jnp.pad(x, ((0, b_pad - B), (0, 0))).T  # (S, b_pad)
    b1c = b1.reshape(H, 1)
    b2c = b2.reshape(A, 1)

    out_t = pl.pallas_call(
        qnet_kernel,
        out_shape=jax.ShapeDtypeStruct((A, b_pad), jnp.float32),
        grid_spec=pltpu.PrefetchScalarGridSpec(
            num_scalar_prefetch=0,
            grid=(b_pad // tb,),
            in_specs=[
                pl.BlockSpec((S, tb), lambda i: (0, i)),  # x tile (double-buffered)
                pl.BlockSpec((H, S), lambda i: (0, 0)),   # weights: VMEM-resident
                pl.BlockSpec((H, 1), lambda i: (0, 0)),
                pl.BlockSpec((A, H), lambda i: (0, 0)),
                pl.BlockSpec((A, 1), lambda i: (0, 0)),
            ],
            out_specs=pl.BlockSpec((A, tb), lambda i: (0, i)),
        ),
        compiler_params=pltpu.CompilerParams(
            dimension_semantics=("parallel",),
        ),
    )(x_t, w1, b1c, w2, b2c)

    return out_t[:, :B].T  # (B, A)


if __name__ == "__main__":
    # Small shapes consistent with the module: QNet(state_dim=4, action_dim=2), batch=2
    state_dim, hidden, action_dim, batch = 4, 10, 2, 2

    key = jax.random.PRNGKey(0)
    k_x, k_w1, k_b1, k_w2, k_b2, k_xbig = jax.random.split(key, 6)

    x = jax.random.normal(k_x, (batch, state_dim), dtype=jnp.float32)

    # Parameters in native nn.Linear layout (out_features, in_features);
    # weights ~ N(0, 0.1) as in the module's __init__, small deterministic biases.
    w1 = 0.1 * jax.random.normal(k_w1, (hidden, state_dim), dtype=jnp.float32)
    b1 = 0.01 * jax.random.normal(k_b1, (hidden,), dtype=jnp.float32)
    w2 = 0.1 * jax.random.normal(k_w2, (action_dim, hidden), dtype=jnp.float32)
    b2 = 0.01 * jax.random.normal(k_b2, (action_dim,), dtype=jnp.float32)

    def ref_forward(xx):  # plain-JAX reference, same math as the PyTorch forward
        return jnp.maximum(xx @ w1.T + b1, 0.0) @ w2.T + b2

    # Small-batch check (single grid step).
    out = jax.block_until_ready(qnet_forward(x, w1, b1, w2, b2))
    assert out.shape == (batch, action_dim)
    assert jnp.allclose(out, ref_forward(x), atol=1e-5), "mismatch vs reference (small batch)"

    # Larger, non-multiple batch: exercises the multi-step batch grid,
    # lane padding, and the VMEM-resident weight path.
    big_batch = 1027
    x_big = jax.random.normal(k_xbig, (big_batch, state_dim), dtype=jnp.float32)
    out_big = jax.block_until_ready(qnet_forward(x_big, w1, b1, w2, b2))
    assert out_big.shape == (big_batch, action_dim)
    assert jnp.allclose(out_big, ref_forward(x_big), atol=1e-5), "mismatch vs reference (big batch)"

    print("KERNEL_OK")
</pallas_src>

<mosaic_0001>
module attributes {stable_mosaic.version = 11 : i64} {
  func.func @qnet_kernel(%arg0: i32, %arg1: memref<4x128xf32, #tpu.memory_space<vmem>>, %arg2: memref<10x4xf32, #tpu.memory_space<vmem>>, %arg3: memref<10x1xf32, #tpu.memory_space<vmem>>, %arg4: memref<2x10xf32, #tpu.memory_space<vmem>>, %arg5: memref<2x1xf32, #tpu.memory_space<vmem>>, %arg6: memref<2x128xf32, #tpu.memory_space<vmem>>) attributes {dimension_semantics = [#tpu.dimension_semantics<parallel>], iteration_bounds = array<i64: 1>, scalar_prefetch = 0 : i64, scratch_operands = 0 : i64, tpu.core_type = #tpu.core_type<tc>, window_params = [{transform_indices = @transform_0, window_bounds = array<i64: 4, 128>}, {pipeline_mode = #tpu.pipeline_mode<synchronous>, transform_indices = @transform_1, window_bounds = array<i64: 10, 4>}, {pipeline_mode = #tpu.pipeline_mode<synchronous>, transform_indices = @transform_2, window_bounds = array<i64: 10, 1>}, {pipeline_mode = #tpu.pipeline_mode<synchronous>, transform_indices = @transform_3, window_bounds = array<i64: 2, 10>}, {pipeline_mode = #tpu.pipeline_mode<synchronous>, transform_indices = @transform_4, window_bounds = array<i64: 2, 1>}, {transform_indices = @transform_5, window_bounds = array<i64: 2, 128>}]} {
    %c0 = arith.constant 0 : index
    %c0_0 = arith.constant 0 : index
    %0 = vector.load %arg1[%c0, %c0_0] : memref<4x128xf32, #tpu.memory_space<vmem>>, vector<4x128xf32>
    %c0_1 = arith.constant 0 : index
    %c0_2 = arith.constant 0 : index
    %1 = vector.load %arg2[%c0_1, %c0_2] : memref<10x4xf32, #tpu.memory_space<vmem>>, vector<10x4xf32>
    %c0_3 = arith.constant 0 : index
    %c0_4 = arith.constant 0 : index
    %2 = vector.load %arg3[%c0_3, %c0_4] : memref<10x1xf32, #tpu.memory_space<vmem>>, vector<10x1xf32>
    %c0_5 = arith.constant 0 : index
    %c0_6 = arith.constant 0 : index
    %3 = vector.load %arg4[%c0_5, %c0_6] : memref<2x10xf32, #tpu.memory_space<vmem>>, vector<2x10xf32>
    %c0_7 = arith.constant 0 : index
    %c0_8 = arith.constant 0 : index
    %4 = vector.load %arg5[%c0_7, %c0_8] : memref<2x1xf32, #tpu.memory_space<vmem>>, vector<2x1xf32>
    %5 = vector.extract_strided_slice %1 {offsets = [0, 0], sizes = [10, 1], strides = [1, 1]} : vector<10x4xf32> to vector<10x1xf32>
    %6 = vector.extract_strided_slice %0 {offsets = [0, 0], sizes = [1, 128], strides = [1, 1]} : vector<4x128xf32> to vector<1x128xf32>
    %7 = vector.broadcast %5 : vector<10x1xf32> to vector<10x128xf32>
    %8 = vector.broadcast %6 : vector<1x128xf32> to vector<10x128xf32>
    %9 = arith.mulf %7, %8 : vector<10x128xf32>
    %10 = vector.extract_strided_slice %1 {offsets = [0, 1], sizes = [10, 1], strides = [1, 1]} : vector<10x4xf32> to vector<10x1xf32>
    %11 = vector.extract_strided_slice %0 {offsets = [1, 0], sizes = [1, 128], strides = [1, 1]} : vector<4x128xf32> to vector<1x128xf32>
    %12 = vector.broadcast %10 : vector<10x1xf32> to vector<10x128xf32>
    %13 = vector.broadcast %11 : vector<1x128xf32> to vector<10x128xf32>
    %14 = arith.mulf %12, %13 : vector<10x128xf32>
    %15 = arith.addf %9, %14 : vector<10x128xf32>
    %16 = vector.extract_strided_slice %1 {offsets = [0, 2], sizes = [10, 1], strides = [1, 1]} : vector<10x4xf32> to vector<10x1xf32>
    %17 = vector.extract_strided_slice %0 {offsets = [2, 0], sizes = [1, 128], strides = [1, 1]} : vector<4x128xf32> to vector<1x128xf32>
    %18 = vector.broadcast %16 : vector<10x1xf32> to vector<10x128xf32>
    %19 = vector.broadcast %17 : vector<1x128xf32> to vector<10x128xf32>
    %20 = arith.mulf %18, %19 : vector<10x128xf32>
    %21 = arith.addf %15, %20 : vector<10x128xf32>
    %22 = vector.extract_strided_slice %1 {offsets = [0, 3], sizes = [10, 1], strides = [1, 1]} : vector<10x4xf32> to vector<10x1xf32>
    %23 = vector.extract_strided_slice %0 {offsets = [3, 0], sizes = [1, 128], strides = [1, 1]} : vector<4x128xf32> to vector<1x128xf32>
    %24 = vector.broadcast %22 : vector<10x1xf32> to vector<10x128xf32>
    %25 = vector.broadcast %23 : vector<1x128xf32> to vector<10x128xf32>
    %26 = arith.mulf %24, %25 : vector<10x128xf32>
    %27 = arith.addf %21, %26 : vector<10x128xf32>
    %28 = vector.broadcast %2 : vector<10x1xf32> to vector<10x128xf32>
    %29 = arith.addf %27, %28 : vector<10x128xf32>
    %cst = arith.constant 0.000000e+00 : f32
    %30 = vector.broadcast %cst : f32 to vector<10x128xf32>
    %31 = arith.maximumf %29, %30 : vector<10x128xf32>
    %32 = vector.extract_strided_slice %3 {offsets = [0, 0], sizes = [2, 1], strides = [1, 1]} : vector<2x10xf32> to vector<2x1xf32>
    %33 = vector.extract_strided_slice %31 {offsets = [0, 0], sizes = [1, 128], strides = [1, 1]} : vector<10x128xf32> to vector<1x128xf32>
    %34 = vector.broadcast %32 : vector<2x1xf32> to vector<2x128xf32>
    %35 = vector.broadcast %33 : vector<1x128xf32> to vector<2x128xf32>
    %36 = arith.mulf %34, %35 : vector<2x128xf32>
    %37 = vector.extract_strided_slice %3 {offsets = [0, 1], sizes = [2, 1], strides = [1, 1]} : vector<2x10xf32> to vector<2x1xf32>
    %38 = vector.extract_strided_slice %31 {offsets = [1, 0], sizes = [1, 128], strides = [1, 1]} : vector<10x128xf32> to vector<1x128xf32>
    %39 = vector.broadcast %37 : vector<2x1xf32> to vector<2x128xf32>
    %40 = vector.broadcast %38 : vector<1x128xf32> to vector<2x128xf32>
    %41 = arith.mulf %39, %40 : vector<2x128xf32>
    %42 = arith.addf %36, %41 : vector<2x128xf32>
    %43 = vector.extract_strided_slice %3 {offsets = [0, 2], sizes = [2, 1], strides = [1, 1]} : vector<2x10xf32> to vector<2x1xf32>
    %44 = vector.extract_strided_slice %31 {offsets = [2, 0], sizes = [1, 128], strides = [1, 1]} : vector<10x128xf32> to vector<1x128xf32>
    %45 = vector.broadcast %43 : vector<2x1xf32> to vector<2x128xf32>
    %46 = vector.broadcast %44 : vector<1x128xf32> to vector<2x128xf32>
    %47 = arith.mulf %45, %46 : vector<2x128xf32>
    %48 = arith.addf %42, %47 : vector<2x128xf32>
    %49 = vector.extract_strided_slice %3 {offsets = [0, 3], sizes = [2, 1], strides = [1, 1]} : vector<2x10xf32> to vector<2x1xf32>
    %50 = vector.extract_strided_slice %31 {offsets = [3, 0], sizes = [1, 128], strides = [1, 1]} : vector<10x128xf32> to vector<1x128xf32>
    %51 = vector.broadcast %49 : vector<2x1xf32> to vector<2x128xf32>
    %52 = vector.broadcast %50 : vector<1x128xf32> to vector<2x128xf32>
    %53 = arith.mulf %51, %52 : vector<2x128xf32>
    %54 = arith.addf %48, %53 : vector<2x128xf32>
    %55 = vector.extract_strided_slice %3 {offsets = [0, 4], sizes = [2, 1], strides = [1, 1]} : vector<2x10xf32> to vector<2x1xf32>
    %56 = vector.extract_strided_slice %31 {offsets = [4, 0], sizes = [1, 128], strides = [1, 1]} : vector<10x128xf32> to vector<1x128xf32>
    %57 = vector.broadcast %55 : vector<2x1xf32> to vector<2x128xf32>
    %58 = vector.broadcast %56 : vector<1x128xf32> to vector<2x128xf32>
    %59 = arith.mulf %57, %58 : vector<2x128xf32>
    %60 = arith.addf %54, %59 : vector<2x128xf32>
    %61 = vector.extract_strided_slice %3 {offsets = [0, 5], sizes = [2, 1], strides = [1, 1]} : vector<2x10xf32> to vector<2x1xf32>
    %62 = vector.extract_strided_slice %31 {offsets = [5, 0], sizes = [1, 128], strides = [1, 1]} : vector<10x128xf32> to vector<1x128xf32>
    %63 = vector.broadcast %61 : vector<2x1xf32> to vector<2x128xf32>
    %64 = vector.broadcast %62 : vector<1x128xf32> to vector<2x128xf32>
    %65 = arith.mulf %63, %64 : vector<2x128xf32>
    %66 = arith.addf %60, %65 : vector<2x128xf32>
    %67 = vector.extract_strided_slice %3 {offsets = [0, 6], sizes = [2, 1], strides = [1, 1]} : vector<2x10xf32> to vector<2x1xf32>
    %68 = vector.extract_strided_slice %31 {offsets = [6, 0], sizes = [1, 128], strides = [1, 1]} : vector<10x128xf32> to vector<1x128xf32>
    %69 = vector.broadcast %67 : vector<2x1xf32> to vector<2x128xf32>
    %70 = vector.broadcast %68 : vector<1x128xf32> to vector<2x128xf32>
    %71 = arith.mulf %69, %70 : vector<2x128xf32>
    %72 = arith.addf %66, %71 : vector<2x128xf32>
    %73 = vector.extract_strided_slice %3 {offsets = [0, 7], sizes = [2, 1], strides = [1, 1]} : vector<2x10xf32> to vector<2x1xf32>
    %74 = vector.extract_strided_slice %31 {offsets = [7, 0], sizes = [1, 128], strides = [1, 1]} : vector<10x128xf32> to vector<1x128xf32>
    %75 = vector.broadcast %73 : vector<2x1xf32> to vector<2x128xf32>
    %76 = vector.broadcast %74 : vector<1x128xf32> to vector<2x128xf32>
    %77 = arith.mulf %75, %76 : vector<2x128xf32>
    %78 = arith.addf %72, %77 : vector<2x128xf32>
    %79 = vector.extract_strided_slice %3 {offsets = [0, 8], sizes = [2, 1], strides = [1, 1]} : vector<2x10xf32> to vector<2x1xf32>
    %80 = vector.extract_strided_slice %31 {offsets = [8, 0], sizes = [1, 128], strides = [1, 1]} : vector<10x128xf32> to vector<1x128xf32>
    %81 = vector.broadcast %79 : vector<2x1xf32> to vector<2x128xf32>
    %82 = vector.broadcast %80 : vector<1x128xf32> to vector<2x128xf32>
    %83 = arith.mulf %81, %82 : vector<2x128xf32>
    %84 = arith.addf %78, %83 : vector<2x128xf32>
    %85 = vector.extract_strided_slice %3 {offsets = [0, 9], sizes = [2, 1], strides = [1, 1]} : vector<2x10xf32> to vector<2x1xf32>
    %86 = vector.extract_strided_slice %31 {offsets = [9, 0], sizes = [1, 128], strides = [1, 1]} : vector<10x128xf32> to vector<1x128xf32>
    %87 = vector.broadcast %85 : vector<2x1xf32> to vector<2x128xf32>
    %88 = vector.broadcast %86 : vector<1x128xf32> to vector<2x128xf32>
    %89 = arith.mulf %87, %88 : vector<2x128xf32>
    %90 = arith.addf %84, %89 : vector<2x128xf32>
    %91 = vector.broadcast %4 : vector<2x1xf32> to vector<2x128xf32>
    %92 = arith.addf %90, %91 : vector<2x128xf32>
    %c0_9 = arith.constant 0 : index
    %c0_10 = arith.constant 0 : index
    %93 = vector.load %arg6[%c0_9, %c0_10] : memref<2x128xf32, #tpu.memory_space<vmem>>, vector<2x128xf32>
    tpu.vector_store %arg6[%c0_9, %c0_10], %92 {strides = array<i32>} : memref<2x128xf32, #tpu.memory_space<vmem>>, vector<2x128xf32>,
    return
  }
  func.func @transform_0(%arg0: i32) -> (i32, i32) {
    %c0_i32 = arith.constant 0 : i32
    %c0_i32_0 = arith.constant 0 : i32
    return %c0_i32, %arg0 : i32, i32
  }
  func.func @transform_1(%arg0: i32) -> (i32, i32) {
    %c0_i32 = arith.constant 0 : i32
    %c0_i32_0 = arith.constant 0 : i32
    %c0_i32_1 = arith.constant 0 : i32
    return %c0_i32, %c0_i32_0 : i32, i32
  }
  func.func @transform_2(%arg0: i32) -> (i32, i32) {
    %c0_i32 = arith.constant 0 : i32
    %c0_i32_0 = arith.constant 0 : i32
    %c0_i32_1 = arith.constant 0 : i32
    return %c0_i32, %c0_i32_0 : i32, i32
  }
  func.func @transform_3(%arg0: i32) -> (i32, i32) {
    %c0_i32 = arith.constant 0 : i32
    %c0_i32_0 = arith.constant 0 : i32
    %c0_i32_1 = arith.constant 0 : i32
    return %c0_i32, %c0_i32_0 : i32, i32
  }
  func.func @transform_4(%arg0: i32) -> (i32, i32) {
    %c0_i32 = arith.constant 0 : i32
    %c0_i32_0 = arith.constant 0 : i32
    %c0_i32_1 = arith.constant 0 : i32
    return %c0_i32, %c0_i32_0 : i32, i32
  }
  func.func @transform_5(%arg0: i32) -> (i32, i32) {
    %c0_i32 = arith.constant 0 : i32
    %c0_i32_0 = arith.constant 0 : i32
    return %c0_i32, %arg0 : i32, i32
  }
}

</mosaic_0001>

<llo_original>
// kernel: tpu_custom_call.1
$region0: #{tpu_custom_call.1}
  #allocation0 [shape = 'u32[]', space=smem, size = 0x4, offset = 0x4, fixed_abs, tag = 'smem constant byte address 0x4 - core index']
  #allocation1 [shape = 'u32[144,128]{1,0:T(1,128)}', space=vmem, size = 0x12000, scoped, tag = 'internal scratch']
  %s0 = inlined_call_operand.vmem [shape: f32[4,128], index: 0, kind: input, shape index: {}]
  %s1 = inlined_call_operand.vmem [shape: f32[10,4], index: 1, kind: input, shape index: {}]
  %s2 = inlined_call_operand.vmem [shape: f32[10,1], index: 2, kind: input, shape index: {}]
  %s3 = inlined_call_operand.vmem [shape: f32[2,10], index: 3, kind: input, shape index: {}]
  %s4 = inlined_call_operand.vmem [shape: f32[2,1], index: 4, kind: input, shape index: {}]
  %s5 = inlined_call_operand.hbm [shape: f32[2,128], index: 5, kind: output, shape index: {}]
  %s6 = sld [smem:[#allocation0]]
  $region30: #{tpu_custom_call.1} parent=0
    _
  %s8 = ssub.s32 1, %s6
  %s9 = scalar_select 0, %s8, %s6
  $region1: #{tpu_custom_call.1} parent=0
    #allocation2 [shape = 'u8[1024]{0}', space=vmem, size = 0x400, scoped, tag = 'output window, operand 0, single buffered']
    #allocation3 [shape = 's32[1]{0}', space=sflag, size = 0x4, scoped, tag = 'scoped memory for tpu_custom_call.1']
    %10 = vsyncpa [#allocation3], 0
    // Predicated region
    $region2: #{tpu_custom_call.1} parent=1 // pred_check
      _
    $region3: #{tpu_custom_call.1} parent=1 // pred_check_branch
      %12 = sbr.rel (0) target = $region5
    $region4: #{tpu_custom_call.1} parent=1 // pred_region
      _
    $region5: #{tpu_custom_call.1} parent=1 // pred_fallthru
      _
    // Predicated region
    $region6: #{tpu_custom_call.1} parent=1 // pred_check
      _
    $region7: #{tpu_custom_call.1} parent=1 // pred_check_branch
      %14 = sbr.rel (0) target = $region9
    $region8: #{tpu_custom_call.1} parent=1 // pred_region
      _
    $region9: #{tpu_custom_call.1} parent=1 // pred_fallthru
      _
    // Predicated region
    $region10: #{tpu_custom_call.1} parent=1 // pred_check
      _
    $region11: #{tpu_custom_call.1} parent=1 // pred_check_branch
      %16 = sbr.rel (0) target = $region13
    $region12: #{tpu_custom_call.1} parent=1 // pred_region
      _
    $region13: #{tpu_custom_call.1} parent=1 // pred_fallthru
      _
    // Predicated region
    $region14: #{tpu_custom_call.1} parent=1 // pred_check
      _
    $region15: #{tpu_custom_call.1} parent=1 // pred_check_branch
      %18 = sbr.rel (0) target = $region17
    $region16: #{tpu_custom_call.1} parent=1 // pred_region
      _
    $region17: #{tpu_custom_call.1} parent=1 // pred_fallthru
      _
    // Predicated region
    $region18: #{tpu_custom_call.1} parent=1 // pred_check
      _
    $region19: #{tpu_custom_call.1} parent=1 // pred_check_branch
      %20 = sbr.rel (0) target = $region21
    $region20: #{tpu_custom_call.1} parent=1 // pred_region
      _
    $region21: #{tpu_custom_call.1} parent=1 // pred_fallthru
      _
    %v21 = vld [vmem:[%s0] sm:$0xf]
    %v22 = vld [vmem:[%s1] sm:$0xff]
    %v23 = vld [vmem:[%s1 + $0x8] sm:$0x3]
    %v24 = vld [vmem:[%s2] sm:$0xff]
    %v25 = vld [vmem:[%s2 + $0x8] sm:$0x3]
    %v26 = vld [vmem:[%s3] sm:$0x3]
    %v27 = vld [vmem:[%s4] sm:$0x3]
    %29 = vset.pattern.permute.xlu0 0
    %30 = vperm.xlu0 %29, %v22
    %v31 = vpop.permute.xlu0 %30
    %34 = vset.pattern.permute.xlu0 0
    %35 = vperm.xlu0 %34, %v23
    %v36 = vpop.permute.xlu0 %35
    %v38 = vlaneseq
    %v39 = vshrl.u32 %v38, 7
    %v40 = vsub.s32 0, %v39
    %v41 = vrot.slane %v21, %v40
    %v42 = vmul.f32 %v31, %v41
    %v43 = vmul.f32 %v36, %v41
    %44 = vset.pattern.permute.xlu0 1
    %45 = vperm.xlu0 %44, %v22
    %v46 = vpop.permute.xlu0 %45
    %48 = vset.pattern.permute.xlu0 1
    %49 = vperm.xlu0 %48, %v23
    %v50 = vpop.permute.xlu0 %49
    %v52 = vlaneseq
    %v53 = vshrl.u32 %v52, 7
    %v54 = vsub.s32 1, %v53
    %v55 = vrot.slane %v21, %v54
    %v56 = vmul.f32 %v46, %v55
    %v57 = vmul.f32 %v50, %v55
    %v58 = vadd.f32 %v42, %v56
    %v59 = vadd.f32 %v43, %v57
    %60 = vset.pattern.permute.xlu0 2
    %61 = vperm.xlu0 %60, %v22
    %v62 = vpop.permute.xlu0 %61
    %64 = vset.pattern.permute.xlu0 2
    %65 = vperm.xlu0 %64, %v23
    %v66 = vpop.permute.xlu0 %65
    %v68 = vlaneseq
    %v69 = vshrl.u32 %v68, 7
    %v70 = vsub.s32 2, %v69
    %v71 = vrot.slane %v21, %v70
    %v72 = vmul.f32 %v62, %v71
    %v73 = vmul.f32 %v66, %v71
    %v74 = vadd.f32 %v58, %v72
    %v75 = vadd.f32 %v59, %v73
    %76 = vset.pattern.permute.xlu0 3
    %77 = vperm.xlu0 %76, %v22
    %v78 = vpop.permute.xlu0 %77
    %80 = vset.pattern.permute.xlu0 3
    %81 = vperm.xlu0 %80, %v23
    %v82 = vpop.permute.xlu0 %81
    %v84 = vlaneseq
    %v85 = vshrl.u32 %v84, 7
    %v86 = vsub.s32 3, %v85
    %v87 = vrot.slane %v21, %v86
    %v88 = vmul.f32 %v78, %v87
    %v89 = vmul.f32 %v82, %v87
    %v90 = vadd.f32 %v74, %v88
    %v91 = vadd.f32 %v75, %v89
    %93 = vset.pattern.permute.xlu0 0
    %94 = vperm.xlu0 %93, %v24
    %v95 = vpop.permute.xlu0 %94
    %98 = vset.pattern.permute.xlu0 0
    %99 = vperm.xlu0 %98, %v25
    %v100 = vpop.permute.xlu0 %99
    %v102 = vadd.f32 %v90, %v95
    %v103 = vadd.f32 %v91, %v100
    %v104 = vmax.f32 %v102, 0.0
    %v105 = vmax.f32 %v103, 0.0
    %107 = vset.pattern.permute.xlu0 0
    %108 = vperm.xlu0 %107, %v26
    %v109 = vpop.permute.xlu0 %108
    %v111 = vlaneseq
    %v112 = vshrl.u32 %v111, 7
    %v113 = vsub.s32 0, %v112
    %v114 = vrot.slane %v104, %v113
    %v115 = vmul.f32 %v109, %v114
    %116 = vset.pattern.permute.xlu0 1
    %117 = vperm.xlu0 %116, %v26
    %v118 = vpop.permute.xlu0 %117
    %v120 = vlaneseq
    %v121 = vshrl.u32 %v120, 7
    %v122 = vsub.s32 1, %v121
    %v123 = vrot.slane %v104, %v122
    %v124 = vmul.f32 %v118, %v123
    %v125 = vadd.f32 %v115, %v124
    %126 = vset.pattern.permute.xlu0 2
    %127 = vperm.xlu0 %126, %v26
    %v128 = vpop.permute.xlu0 %127
    %v130 = vlaneseq
    %v131 = vshrl.u32 %v130, 7
    %v132 = vsub.s32 2, %v131
    %v133 = vrot.slane %v104, %v132
    %v134 = vmul.f32 %v128, %v133
    %v135 = vadd.f32 %v125, %v134
    %136 = vset.pattern.permute.xlu0 3
    %137 = vperm.xlu0 %136, %v26
    %v138 = vpop.permute.xlu0 %137
    %v140 = vlaneseq
    %v141 = vshrl.u32 %v140, 7
    %v142 = vsub.s32 3, %v141
    %v143 = vrot.slane %v104, %v142
    %v144 = vmul.f32 %v138, %v143
    %v145 = vadd.f32 %v135, %v144
    %146 = vset.pattern.permute.xlu0 4
    %147 = vperm.xlu0 %146, %v26
    %v148 = vpop.permute.xlu0 %147
    %v150 = vlaneseq
    %v151 = vshrl.u32 %v150, 7
    %v152 = vsub.s32 4, %v151
    %v153 = vrot.slane %v104, %v152
    %v154 = vmul.f32 %v148, %v153
    %v155 = vadd.f32 %v145, %v154
    %156 = vset.pattern.permute.xlu0 5
    %157 = vperm.xlu0 %156, %v26
    %v158 = vpop.permute.xlu0 %157
    %v160 = vlaneseq
    %v161 = vshrl.u32 %v160, 7
    %v162 = vsub.s32 5, %v161
    %v163 = vrot.slane %v104, %v162
    %v164 = vmul.f32 %v158, %v163
    %v165 = vadd.f32 %v155, %v164
    %166 = vset.pattern.permute.xlu0 6
    %167 = vperm.xlu0 %166, %v26
    %v168 = vpop.permute.xlu0 %167
    %v170 = vlaneseq
    %v171 = vshrl.u32 %v170, 7
    %v172 = vsub.s32 6, %v171
    %v173 = vrot.slane %v104, %v172
    %v174 = vmul.f32 %v168, %v173
    %v175 = vadd.f32 %v165, %v174
    %176 = vset.pattern.permute.xlu0 7
    %177 = vperm.xlu0 %176, %v26
    %v178 = vpop.permute.xlu0 %177
    %v180 = vlaneseq
    %v181 = vshrl.u32 %v180, 7
    %v182 = vsub.s32 7, %v181
    %v183 = vrot.slane %v104, %v182
    %v184 = vmul.f32 %v178, %v183
    %v185 = vadd.f32 %v175, %v184
    %186 = vset.pattern.permute.xlu0 8
    %187 = vperm.xlu0 %186, %v26
    %v188 = vpop.permute.xlu0 %187
    %v190 = vlaneseq
    %v191 = vshrl.u32 %v190, 7
    %v192 = vsub.s32 0, %v191
    %v193 = vrot.slane %v105, %v192
    %v194 = vmul.f32 %v188, %v193
    %v195 = vadd.f32 %v185, %v194
    %196 = vset.pattern.permute.xlu0 9
    %197 = vperm.xlu0 %196, %v26
    %v198 = vpop.permute.xlu0 %197
    %v200 = vlaneseq
    %v201 = vshrl.u32 %v200, 7
    %v202 = vsub.s32 1, %v201
    %v203 = vrot.slane %v105, %v202
    %v204 = vmul.f32 %v198, %v203
    %v205 = vadd.f32 %v195, %v204
    %207 = vset.pattern.permute.xlu0 0
    %208 = vperm.xlu0 %207, %v27
    %v209 = vpop.permute.xlu0 %208
    %v211 = vadd.f32 %v205, %v209
    %212 = vst [vmem:[#allocation2] sm:$0x3] %v211
    // Predicated region
    $region22: #{tpu_custom_call.1} parent=1 // pred_check
      _
    $region23: #{tpu_custom_call.1} parent=1 // pred_check_branch
      %214 = sbr.rel (0) target = $region25
    $region24: #{tpu_custom_call.1} parent=1 // pred_region
      %s216 = ssub.s32 32, 32
      %217 = vsyncadd [#allocation3], %s216
      %s219 = sshll.u32 [#allocation2], 4
      %s220 = int_to_ptr.vmem [resolvable:$true] %s219
      %222 = dma.vmem_to_hbm [thread:$0]  %s220, 32, %s5, [#allocation3]
    $region25: #{tpu_custom_call.1} parent=1 // pred_fallthru
      _
    // Predicated region
    $region26: #{tpu_custom_call.1} parent=1 // pred_check
      _
    $region27: #{tpu_custom_call.1} parent=1 // pred_check_branch
      %224 = sbr.rel (0) target = $region29
    $region28: #{tpu_custom_call.1} parent=1 // pred_region
      %225 = dma.done [#allocation3], 32
    $region29: #{tpu_custom_call.1} parent=1 // pred_fallthru
      _
    %226 = vsyncpa [#allocation3], 1

</llo_original>
